<compile_context>
chip_gen: v5e
topology: v5e:2x2
jax: 0.10.0
libtpu: 0.0.40
codegen_flags: <defaults>
</compile_context>

<pallas_src>
import jax
import jax.numpy as jnp
from jax.experimental import pallas as pl
from jax.experimental.pallas import tpu as pltpu

INPUT_DIM = 32          # input_dim (X_train_scaled.shape[1]) -- small synthetic choice
ATTENTION_DIM = 128     # attention_dim from the reference script
HIDDEN_DIM = 256        # hidden_dim from the reference script
NUM_CLASSES = 2
OUT_PAD = 128           # lane-dense padded width for the fc3 output slab
BATCH = 8
LEAKY_SLOPE = 0.01      # F.leaky_relu default
BN_EPS = 1e-5           # nn.BatchNorm1d default


def _round_up(n, m):
    return ((n + m - 1) // m) * m


def _fused_mlp_kernel(x_ref, w1_ref, b1_ref, w2_ref, b2_ref, w3_ref, b3_ref,
                      out_ref):
    # Attention branch: softmax over the singleton dim-1 is exactly 1.0, so
    # weighted_features == x; the attention Linear layers cannot affect outputs
    # and are removed entirely (wf / aw are produced in the wrapper, not here).
    x = x_ref[...].astype(jnp.bfloat16)                       # (TB, D) bf16 for MXU

    def leaky_relu(y):
        return jnp.where(y >= 0.0, y, LEAKY_SLOPE * y)

    # fc1 (BN1 folded) -> leaky_relu -> dropout(identity in eval)
    y = jnp.dot(x, w1_ref[...], preferred_element_type=jnp.float32) + b1_ref[...]
    y = leaky_relu(y)                                          # f32 elementwise

    # fc2 (BN2 folded) -> leaky_relu -> dropout(identity in eval)
    y = jnp.dot(y.astype(jnp.bfloat16), w2_ref[...],
                preferred_element_type=jnp.float32) + b2_ref[...]
    y = leaky_relu(y)

    # fc3 into a lane-dense 128-wide slab (padded weights); sliced outside.
    out_ref[...] = (jnp.dot(y.astype(jnp.bfloat16), w3_ref[...],
                            preferred_element_type=jnp.float32) + b3_ref[...])


def fold_params(params):
    """One-time model-load prep: fold eval-mode BatchNorm into fc1/fc2, zero-pad
    fc3 to a lane-dense 128-wide slab, and cast weights to bf16 for the MXU."""
    (wa1, ba1, wa2, ba2,
     w1, b1, g1, be1, m1, v1,
     w2, b2, g2, be2, m2, v2,
     w3, b3) = params
    del wa1, ba1, wa2, ba2  # attention branch is an exact no-op (softmax over size-1 dim)

    s1 = g1 * jax.lax.rsqrt(v1 + BN_EPS)                      # (1, H)
    w1f = (w1 * s1).astype(jnp.bfloat16)
    b1f = (b1 - m1) * s1 + be1                                 # f32 bias

    s2 = g2 * jax.lax.rsqrt(v2 + BN_EPS)
    w2f = (w2 * s2).astype(jnp.bfloat16)
    b2f = (b2 - m2) * s2 + be2

    w3p = jnp.zeros((w3.shape[0], OUT_PAD), w3.dtype).at[:, :w3.shape[1]].set(w3)
    w3p = w3p.astype(jnp.bfloat16)
    b3p = jnp.zeros((1, OUT_PAD), b3.dtype).at[:, :b3.shape[1]].set(b3)
    return w1f, b1f, w2f, b2f, w3p, b3p


def _choose_batch_tile(B, batch_block):
    """Pick a sublane-aligned batch tile; for large batches align to the MXU M
    dim (256) and make the grid have >= 2 steps so v7x's two TensorCores both
    get work under dimension_semantics=("parallel",)."""
    B8 = _round_up(B, 8)
    if B8 <= 256:
        return min(B8, batch_block)
    return min(batch_block, _round_up(pl.cdiv(B8, 2), 256))


def improved_attention_forward(x, folded_params, *, batch_block=512):
    """Fused eval-mode forward pass. `folded_params` comes from fold_params()
    (BN-folded, fc3-padded, bf16-cast) -- fold once at load time, not per call."""
    B, D = x.shape
    w1f, b1f, w2f, b2f, w3p, b3p = folded_params
    H = w1f.shape[1]

    TB = _choose_batch_tile(B, batch_block)
    Bp = _round_up(B, TB)
    x_p = jnp.pad(x, ((0, Bp - B), (0, 0))) if Bp != B else x
    grid = (pl.cdiv(Bp, TB),)

    def batch_spec(cols):
        return pl.BlockSpec((TB, cols), lambda i: (i, 0))

    def resident(shape):
        # Same block index every grid step -> weight stays VMEM-resident.
        return pl.BlockSpec(shape, lambda i: (0, 0))

    out_p = pl.pallas_call(
        _fused_mlp_kernel,
        out_shape=jax.ShapeDtypeStruct((Bp, OUT_PAD), jnp.float32),  # padded logits
        grid=grid,
        in_specs=[
            batch_spec(D),
            resident((D, H)), resident((1, H)),
            resident((H, H)), resident((1, H)),
            resident((H, OUT_PAD)), resident((1, OUT_PAD)),
        ],
        out_specs=batch_spec(OUT_PAD),
        compiler_params=pltpu.CompilerParams(
            dimension_semantics=("parallel",)),
    )(x_p, w1f, b1f, w2f, b2f, w3p, b3p)

    out = out_p[:B, :NUM_CLASSES]
    # Attention branch identities (exact): softmax over a size-1 dim is 1.0.
    wf = x                                          # weighted_features == x, no copy
    aw = jnp.ones((B, 1), x.dtype)                  # attention_weights == 1
    return out, wf, aw


def init_params(key):
    """Deterministic PyTorch-style parameter init matching the module's __init__."""
    ks = jax.random.split(key, 5)

    def linear(k, fan_in, fan_out):
        bound = 1.0 / (fan_in ** 0.5)
        kw, kb = jax.random.split(k)
        w = jax.random.uniform(kw, (fan_in, fan_out), jnp.float32, -bound, bound)
        b = jax.random.uniform(kb, (1, fan_out), jnp.float32, -bound, bound)
        return w, b

    wa1, ba1 = linear(ks[0], INPUT_DIM, ATTENTION_DIM)
    wa2, ba2 = linear(ks[1], ATTENTION_DIM, 1)
    w1, b1 = linear(ks[2], INPUT_DIM, HIDDEN_DIM)
    w2, b2 = linear(ks[3], HIDDEN_DIM, HIDDEN_DIM)
    w3, b3 = linear(ks[4], HIDDEN_DIM, NUM_CLASSES)

    # BatchNorm1d defaults: weight=1, bias=0, running_mean=0, running_var=1
    g1 = jnp.ones((1, HIDDEN_DIM), jnp.float32)
    be1 = jnp.zeros((1, HIDDEN_DIM), jnp.float32)
    m1 = jnp.zeros((1, HIDDEN_DIM), jnp.float32)
    v1 = jnp.ones((1, HIDDEN_DIM), jnp.float32)
    g2 = jnp.ones((1, HIDDEN_DIM), jnp.float32)
    be2 = jnp.zeros((1, HIDDEN_DIM), jnp.float32)
    m2 = jnp.zeros((1, HIDDEN_DIM), jnp.float32)
    v2 = jnp.ones((1, HIDDEN_DIM), jnp.float32)

    return (wa1, ba1, wa2, ba2,
            w1, b1, g1, be1, m1, v1,
            w2, b2, g2, be2, m2, v2,
            w3, b3)


def reference_forward(x, params):
    """Pure-JAX reference computing the ORIGINAL (unfolded, un-simplified) math."""
    (wa1, ba1, wa2, ba2,
     w1, b1, g1, be1, m1, v1,
     w2, b2, g2, be2, m2, v2,
     w3, b3) = params

    h = jnp.maximum(x @ wa1 + ba1, 0.0)
    logits = h @ wa2 + ba2
    attn = jax.nn.softmax(logits, axis=1)          # (B,1) -> exactly ones
    wf = x * attn

    def bn(y, g, b, m, v):
        return (y - m) * jax.lax.rsqrt(v + BN_EPS) * g + b

    def lrelu(y):
        return jnp.where(y >= 0.0, y, LEAKY_SLOPE * y)

    y = lrelu(bn(wf @ w1 + b1, g1, be1, m1, v1))
    y = lrelu(bn(y @ w2 + b2, g2, be2, m2, v2))
    out = y @ w3 + b3
    return out, wf, attn


if __name__ == "__main__":
    key = jax.random.PRNGKey(0)
    kx, kp = jax.random.split(key)
    x = jax.random.normal(kx, (BATCH, INPUT_DIM), jnp.float32)
    params = init_params(kp)

    # TODO(synk): dropout (p=0.5) and BatchNorm batch-statistics are training-mode
    # behaviors; this kernel implements the eval-mode forward pass.

    # Hoisted one-time prep (BN folding, fc3 pad, bf16 cast) -- not per call.
    folded = fold_params(params)
    folded = jax.tree_util.tree_map(jax.block_until_ready, folded)

    out, wf, aw = improved_attention_forward(x, folded)
    jax.block_until_ready((out, wf, aw))

    ref_out, ref_wf, ref_aw = reference_forward(x, params)
    assert out.shape == (BATCH, NUM_CLASSES)
    assert wf.shape == (BATCH, INPUT_DIM)
    assert aw.shape == (BATCH, 1)
    assert jnp.allclose(aw, ref_aw, atol=1e-6)
    assert jnp.allclose(wf, ref_wf, atol=1e-6)
    assert jnp.allclose(out, ref_out, atol=1e-2, rtol=1e-2)

    print("KERNEL_OK")
</pallas_src>

<mosaic_0001>
module attributes {stable_mosaic.version = 11 : i64} {
  func.func @_fused_mlp_kernel(%arg0: i32, %arg1: memref<8x32xf32, #tpu.memory_space<vmem>>, %arg2: memref<32x256xbf16, #tpu.memory_space<vmem>>, %arg3: memref<1x256xf32, #tpu.memory_space<vmem>>, %arg4: memref<256x256xbf16, #tpu.memory_space<vmem>>, %arg5: memref<1x256xf32, #tpu.memory_space<vmem>>, %arg6: memref<256x128xbf16, #tpu.memory_space<vmem>>, %arg7: memref<1x128xf32, #tpu.memory_space<vmem>>, %arg8: memref<8x128xf32, #tpu.memory_space<vmem>>) attributes {dimension_semantics = [#tpu.dimension_semantics<parallel>], iteration_bounds = array<i64: 1>, scalar_prefetch = 0 : i64, scratch_operands = 0 : i64, tpu.core_type = #tpu.core_type<tc>, window_params = [{transform_indices = @transform_0, window_bounds = array<i64: 8, 32>}, {pipeline_mode = #tpu.pipeline_mode<synchronous>, transform_indices = @transform_1, window_bounds = array<i64: 32, 256>}, {pipeline_mode = #tpu.pipeline_mode<synchronous>, transform_indices = @transform_2, window_bounds = array<i64: 1, 256>}, {pipeline_mode = #tpu.pipeline_mode<synchronous>, transform_indices = @transform_3, window_bounds = array<i64: 256, 256>}, {pipeline_mode = #tpu.pipeline_mode<synchronous>, transform_indices = @transform_4, window_bounds = array<i64: 1, 256>}, {pipeline_mode = #tpu.pipeline_mode<synchronous>, transform_indices = @transform_5, window_bounds = array<i64: 256, 128>}, {pipeline_mode = #tpu.pipeline_mode<synchronous>, transform_indices = @transform_6, window_bounds = array<i64: 1, 128>}, {transform_indices = @transform_7, window_bounds = array<i64: 8, 128>}]} {
    %c0 = arith.constant 0 : index
    %c0_0 = arith.constant 0 : index
    %0 = vector.load %arg1[%c0, %c0_0] : memref<8x32xf32, #tpu.memory_space<vmem>>, vector<8x32xf32>
    %1 = arith.truncf %0 : vector<8x32xf32> to vector<8x32xbf16>
    %c0_1 = arith.constant 0 : index
    %c0_2 = arith.constant 0 : index
    %2 = vector.load %arg2[%c0_1, %c0_2] : memref<32x256xbf16, #tpu.memory_space<vmem>>, vector<32x256xbf16>
    %cst = arith.constant dense<0.000000e+00> : vector<8x256xf32>
    %3 = tpu.matmul %1, %2, %cst {dimension_numbers = #tpu.dot_dimension_numbers<[1], [0], [0], [1], [0, 0, 1, 1], [], []>} : vector<8x32xbf16>, vector<32x256xbf16>, vector<8x256xf32> -> vector<8x256xf32>
    %c0_3 = arith.constant 0 : index
    %c0_4 = arith.constant 0 : index
    %4 = vector.load %arg3[%c0_3, %c0_4] : memref<1x256xf32, #tpu.memory_space<vmem>>, vector<1x256xf32>
    %5 = vector.broadcast %4 : vector<1x256xf32> to vector<8x256xf32>
    %6 = arith.addf %3, %5 : vector<8x256xf32>
    %cst_5 = arith.constant 0.000000e+00 : f32
    %7 = vector.broadcast %cst_5 : f32 to vector<8x256xf32>
    %8 = arith.cmpf oge, %6, %7 : vector<8x256xf32>
    %cst_6 = arith.constant 0.00999999977 : f32
    %9 = vector.broadcast %cst_6 : f32 to vector<8x256xf32>
    %10 = arith.mulf %9, %6 : vector<8x256xf32>
    %11 = arith.select %8, %6, %10 : vector<8x256xi1>, vector<8x256xf32>
    %12 = arith.truncf %11 : vector<8x256xf32> to vector<8x256xbf16>
    %c0_7 = arith.constant 0 : index
    %c0_8 = arith.constant 0 : index
    %13 = vector.load %arg4[%c0_7, %c0_8] : memref<256x256xbf16, #tpu.memory_space<vmem>>, vector<256x256xbf16>
    %cst_9 = arith.constant dense<0.000000e+00> : vector<8x256xf32>
    %14 = tpu.matmul %12, %13, %cst_9 {dimension_numbers = #tpu.dot_dimension_numbers<[1], [0], [0], [1], [0, 0, 1, 1], [], []>} : vector<8x256xbf16>, vector<256x256xbf16>, vector<8x256xf32> -> vector<8x256xf32>
    %c0_10 = arith.constant 0 : index
    %c0_11 = arith.constant 0 : index
    %15 = vector.load %arg5[%c0_10, %c0_11] : memref<1x256xf32, #tpu.memory_space<vmem>>, vector<1x256xf32>
    %16 = vector.broadcast %15 : vector<1x256xf32> to vector<8x256xf32>
    %17 = arith.addf %14, %16 : vector<8x256xf32>
    %cst_12 = arith.constant 0.000000e+00 : f32
    %18 = vector.broadcast %cst_12 : f32 to vector<8x256xf32>
    %19 = arith.cmpf oge, %17, %18 : vector<8x256xf32>
    %cst_13 = arith.constant 0.00999999977 : f32
    %20 = vector.broadcast %cst_13 : f32 to vector<8x256xf32>
    %21 = arith.mulf %20, %17 : vector<8x256xf32>
    %22 = arith.select %19, %17, %21 : vector<8x256xi1>, vector<8x256xf32>
    %23 = arith.truncf %22 : vector<8x256xf32> to vector<8x256xbf16>
    %c0_14 = arith.constant 0 : index
    %c0_15 = arith.constant 0 : index
    %24 = vector.load %arg6[%c0_14, %c0_15] : memref<256x128xbf16, #tpu.memory_space<vmem>>, vector<256x128xbf16>
    %cst_16 = arith.constant dense<0.000000e+00> : vector<8x128xf32>
    %25 = tpu.matmul %23, %24, %cst_16 {dimension_numbers = #tpu.dot_dimension_numbers<[1], [0], [0], [1], [0, 0, 1, 1], [], []>} : vector<8x256xbf16>, vector<256x128xbf16>, vector<8x128xf32> -> vector<8x128xf32>
    %c0_17 = arith.constant 0 : index
    %c0_18 = arith.constant 0 : index
    %26 = vector.load %arg7[%c0_17, %c0_18] : memref<1x128xf32, #tpu.memory_space<vmem>>, vector<1x128xf32>
    %27 = vector.broadcast %26 : vector<1x128xf32> to vector<8x128xf32>
    %28 = arith.addf %25, %27 : vector<8x128xf32>
    %c0_19 = arith.constant 0 : index
    %c0_20 = arith.constant 0 : index
    %29 = vector.load %arg8[%c0_19, %c0_20] : memref<8x128xf32, #tpu.memory_space<vmem>>, vector<8x128xf32>
    tpu.vector_store %arg8[%c0_19, %c0_20], %28 {strides = array<i32>} : memref<8x128xf32, #tpu.memory_space<vmem>>, vector<8x128xf32>,
    return
  }
  func.func @transform_0(%arg0: i32) -> (i32, i32) {
    %c0_i32 = arith.constant 0 : i32
    %c0_i32_0 = arith.constant 0 : i32
    return %arg0, %c0_i32 : i32, i32
  }
  func.func @transform_1(%arg0: i32) -> (i32, i32) {
    %c0_i32 = arith.constant 0 : i32
    %c0_i32_0 = arith.constant 0 : i32
    %c0_i32_1 = arith.constant 0 : i32
    return %c0_i32, %c0_i32_0 : i32, i32
  }
  func.func @transform_2(%arg0: i32) -> (i32, i32) {
    %c0_i32 = arith.constant 0 : i32
    %c0_i32_0 = arith.constant 0 : i32
    %c0_i32_1 = arith.constant 0 : i32
    return %c0_i32, %c0_i32_0 : i32, i32
  }
  func.func @transform_3(%arg0: i32) -> (i32, i32) {
    %c0_i32 = arith.constant 0 : i32
    %c0_i32_0 = arith.constant 0 : i32
    %c0_i32_1 = arith.constant 0 : i32
    return %c0_i32, %c0_i32_0 : i32, i32
  }
  func.func @transform_4(%arg0: i32) -> (i32, i32) {
    %c0_i32 = arith.constant 0 : i32
    %c0_i32_0 = arith.constant 0 : i32
    %c0_i32_1 = arith.constant 0 : i32
    return %c0_i32, %c0_i32_0 : i32, i32
  }
  func.func @transform_5(%arg0: i32) -> (i32, i32) {
    %c0_i32 = arith.constant 0 : i32
    %c0_i32_0 = arith.constant 0 : i32
    %c0_i32_1 = arith.constant 0 : i32
    return %c0_i32, %c0_i32_0 : i32, i32
  }
  func.func @transform_6(%arg0: i32) -> (i32, i32) {
    %c0_i32 = arith.constant 0 : i32
    %c0_i32_0 = arith.constant 0 : i32
    %c0_i32_1 = arith.constant 0 : i32
    return %c0_i32, %c0_i32_0 : i32, i32
  }
  func.func @transform_7(%arg0: i32) -> (i32, i32) {
    %c0_i32 = arith.constant 0 : i32
    %c0_i32_0 = arith.constant 0 : i32
    return %arg0, %c0_i32 : i32, i32
  }
}

</mosaic_0001>

<llo_original>
// kernel: tpu_custom_call.1
$region0: #{tpu_custom_call.1}
  #allocation0 [shape = 'u32[]', space=smem, size = 0x4, offset = 0x4, fixed_abs, tag = 'smem constant byte address 0x4 - core index']
  #allocation1 [shape = 'u32[72,128]{1,0:T(1,128)}', space=vmem, size = 0x9000, scoped, tag = 'internal scratch']
  %s0 = inlined_call_operand.hbm [shape: f32[8,32], index: 0, kind: input, shape index: {}]
  %s1 = inlined_call_operand.hbm [shape: bf16[32,256], index: 1, kind: input, shape index: {}]
  %s2 = inlined_call_operand.hbm [shape: f32[1,256], index: 2, kind: input, shape index: {}]
  %s3 = inlined_call_operand.hbm [shape: bf16[256,256], index: 3, kind: input, shape index: {}]
  %s4 = inlined_call_operand.vmem [shape: f32[1,256], index: 4, kind: input, shape index: {}]
  %s5 = inlined_call_operand.hbm [shape: bf16[256,128], index: 5, kind: input, shape index: {}]
  %s6 = inlined_call_operand.vmem [shape: f32[1,128], index: 6, kind: input, shape index: {}]
  %s7 = inlined_call_operand.hbm [shape: f32[8,128], index: 7, kind: output, shape index: {}]
  %s8 = sld [smem:[#allocation0]]
  $region58: #{tpu_custom_call.1} parent=0
    _
  %s10 = ssub.s32 1, %s8
  %s11 = scalar_select 0, %s10, %s8
  $region1: #{tpu_custom_call.1} parent=0
    #allocation2 [shape = 'u8[4096]{0}', space=vmem, size = 0x1000, scoped, tag = 'input window, operand 0, single buffered']
    #allocation3 [shape = 's32[1]{0}', space=sflag, size = 0x4, scoped, tag = 'scoped memory for tpu_custom_call.1']
    #allocation4 [shape = 's32[1]{0}', space=sflag, size = 0x4, scoped, tag = 'scoped memory for tpu_custom_call.1']
    #allocation5 [shape = 'u8[16384]{0}', space=vmem, size = 0x4000, scoped, tag = 'input window, operand 1, single buffered']
    #allocation6 [shape = 's32[1]{0}', space=sflag, size = 0x4, scoped, tag = 'scoped memory for tpu_custom_call.1']
    #allocation7 [shape = 'u8[1024]{0}', space=vmem, size = 0x400, scoped, tag = 'input window, operand 2, single buffered']
    #allocation8 [shape = 'u8[131072]{0}', space=vmem, size = 0x20000, scoped, tag = 'input window, operand 3, single buffered']
    #allocation9 [shape = 's32[1]{0}', space=sflag, size = 0x4, scoped, tag = 'scoped memory for tpu_custom_call.1']
    #allocation10 [shape = 'u8[65536]{0}', space=vmem, size = 0x10000, scoped, tag = 'input window, operand 5, single buffered']
    #allocation11 [shape = 'u8[4096]{0}', space=vmem, size = 0x1000, scoped, tag = 'output window, operand 0, single buffered']
    %12 = vsyncpa [#allocation3], 0
    %13 = vsyncpa [#allocation6], 0
    %14 = vsyncpa [#allocation9], 0
    %15 = vsyncpa [#allocation4], 0
    // Predicated region
    $region2: #{tpu_custom_call.1} parent=1 // pred_check
      _
    $region3: #{tpu_custom_call.1} parent=1 // pred_check_branch
      %17 = sbr.rel (0) target = $region5
    $region4: #{tpu_custom_call.1} parent=1 // pred_region
      %19 = vsyncadd [#allocation3], 0
      %s21 = sshll.u32 %s0, 4
      %s22 = int_to_ptr.hbm [resolvable:$true] %s21
      %s23 = sshll.u32 [#allocation2], 4
      %s24 = int_to_ptr.vmem [resolvable:$true] %s23
      %26 = dma.hbm_to_vmem [thread:$0]  %s22, 128, %s24, [#allocation3]
    $region5: #{tpu_custom_call.1} parent=1 // pred_fallthru
      _
    // Predicated region
    $region6: #{tpu_custom_call.1} parent=1 // pred_check
      _
    $region7: #{tpu_custom_call.1} parent=1 // pred_check_branch
      %28 = sbr.rel (0) target = $region9
    $region8: #{tpu_custom_call.1} parent=1 // pred_region
      %30 = vsyncadd [#allocation6], 0
      %s31 = sshll.u32 %s1, 4
      %s32 = int_to_ptr.hbm [resolvable:$true] %s31
      %s33 = sshll.u32 [#allocation5], 4
      %s34 = int_to_ptr.vmem [resolvable:$true] %s33
      %39 = dma.hbm_to_vmem [thread:$0]  %s32, 512, %s34, [#allocation6], 128, 128, 8
    $region9: #{tpu_custom_call.1} parent=1 // pred_fallthru
      _
    // Predicated region
    $region10: #{tpu_custom_call.1} parent=1 // pred_check
      _
    $region11: #{tpu_custom_call.1} parent=1 // pred_check_branch
      %41 = sbr.rel (0) target = $region13
    $region12: #{tpu_custom_call.1} parent=1 // pred_region
      %43 = vsyncadd [#allocation6], 0
      %s45 = sshll.u32 %s2, 4
      %s46 = int_to_ptr.hbm [resolvable:$true] %s45
      %s47 = sshll.u32 [#allocation7], 4
      %s48 = int_to_ptr.vmem [resolvable:$true] %s47
      %50 = dma.hbm_to_vmem [thread:$0]  %s46, 32, %s48, [#allocation6]
    $region13: #{tpu_custom_call.1} parent=1 // pred_fallthru
      _
    // Predicated region
    $region14: #{tpu_custom_call.1} parent=1 // pred_check
      _
    $region15: #{tpu_custom_call.1} parent=1 // pred_check_branch
      %52 = sbr.rel (0) target = $region17
    $region16: #{tpu_custom_call.1} parent=1 // pred_region
      %54 = vsyncadd [#allocation9], 0
      %s55 = sshll.u32 %s3, 4
      %s56 = int_to_ptr.hbm [resolvable:$true] %s55
      %s57 = sshll.u32 [#allocation8], 4
      %s58 = int_to_ptr.vmem [resolvable:$true] %s57
      %63 = dma.hbm_to_vmem [thread:$0]  %s56, 4096, %s58, [#allocation9], 128, 128, 8
    $region17: #{tpu_custom_call.1} parent=1 // pred_fallthru
      _
    // Predicated region
    $region18: #{tpu_custom_call.1} parent=1 // pred_check
      _
    $region19: #{tpu_custom_call.1} parent=1 // pred_check_branch
      %65 = sbr.rel (0) target = $region21
    $region20: #{tpu_custom_call.1} parent=1 // pred_region
      _
    $region21: #{tpu_custom_call.1} parent=1 // pred_fallthru
      _
    // Predicated region
    $region22: #{tpu_custom_call.1} parent=1 // pred_check
      _
    $region23: #{tpu_custom_call.1} parent=1 // pred_check_branch
      %67 = sbr.rel (0) target = $region25
    $region24: #{tpu_custom_call.1} parent=1 // pred_region
      %69 = vsyncadd [#allocation9], 0
      %s70 = sshll.u32 %s5, 4
      %s71 = int_to_ptr.hbm [resolvable:$true] %s70
      %s72 = sshll.u32 [#allocation10], 4
      %s73 = int_to_ptr.vmem [resolvable:$true] %s72
      %78 = dma.hbm_to_vmem [thread:$0]  %s71, 2048, %s73, [#allocation9], 64, 64, 4
    $region25: #{tpu_custom_call.1} parent=1 // pred_fallthru
      _
    // Predicated region
    $region26: #{tpu_custom_call.1} parent=1 // pred_check
      _
    $region27: #{tpu_custom_call.1} parent=1 // pred_check_branch
      %80 = sbr.rel (0) target = $region29
    $region28: #{tpu_custom_call.1} parent=1 // pred_region
      _
    $region29: #{tpu_custom_call.1} parent=1 // pred_fallthru
      _
    // Predicated region
    $region30: #{tpu_custom_call.1} parent=1 // pred_check
      _
    $region31: #{tpu_custom_call.1} parent=1 // pred_check_branch
      %82 = sbr.rel (0) target = $region33
    $region32: #{tpu_custom_call.1} parent=1 // pred_region
      %84 = dma.done [#allocation3], 128
    $region33: #{tpu_custom_call.1} parent=1 // pred_fallthru
      _
    // Predicated region
    $region34: #{tpu_custom_call.1} parent=1 // pred_check
      _
    $region35: #{tpu_custom_call.1} parent=1 // pred_check_branch
      %86 = sbr.rel (0) target = $region37
    $region36: #{tpu_custom_call.1} parent=1 // pred_region
      %88 = dma.done [#allocation6], 512
    $region37: #{tpu_custom_call.1} parent=1 // pred_fallthru
      _
    // Predicated region
    $region38: #{tpu_custom_call.1} parent=1 // pred_check
      _
    $region39: #{tpu_custom_call.1} parent=1 // pred_check_branch
      %90 = sbr.rel (0) target = $region41
    $region40: #{tpu_custom_call.1} parent=1 // pred_region
      %92 = dma.done [#allocation6], 32
    $region41: #{tpu_custom_call.1} parent=1 // pred_fallthru
      _
    // Predicated region
    $region42: #{tpu_custom_call.1} parent=1 // pred_check
      _
    $region43: #{tpu_custom_call.1} parent=1 // pred_check_branch
      %94 = sbr.rel (0) target = $region45
    $region44: #{tpu_custom_call.1} parent=1 // pred_region
      %96 = dma.done [#allocation9], 4096
    $region45: #{tpu_custom_call.1} parent=1 // pred_fallthru
      _
    // Predicated region
    $region46: #{tpu_custom_call.1} parent=1 // pred_check
      _
    $region47: #{tpu_custom_call.1} parent=1 // pred_check_branch
      %98 = sbr.rel (0) target = $region49
    $region48: #{tpu_custom_call.1} parent=1 // pred_region
      %100 = dma.done [#allocation9], 2048
    $region49: #{tpu_custom_call.1} parent=1 // pred_fallthru
      _
    %v102 = vld [vmem:[#allocation2] sm:$0xff]
    %v103 = vpack.c.bf16 %v102, %v102
    %v104 = vld [vmem:[#allocation5] sm:$0xff]
    %v105 = vld [vmem:[#allocation5 + $0x8] sm:$0xff]
    %v106 = vld [vmem:[#allocation5 + $0x10] sm:$0xff]
    %v107 = vld [vmem:[#allocation5 + $0x18] sm:$0xff]
    %v108 = vld [vmem:[#allocation7] sm:$0x3]
    %v110 = vperm.slane %v108, 0
    %v111 = vperm.slane %v108, 1
    %v118 = vunpack.c.l.b16 %v104
    %v119 = vunpack.c.h.b16 %v104
    %v120 = vunpack.c.l.b16 %v105
    %v121 = vunpack.c.h.b16 %v105
    %v122 = vunpack.c.l.b16 %v106
    %v123 = vunpack.c.h.b16 %v106
    %v124 = vunpack.c.l.b16 %v107
    %v125 = vunpack.c.h.b16 %v107
    %v126 = vpack.c.b16 %v120, %v118
    %v127 = vpack.c.b16 %v121, %v119
    %v128 = vpack.c.b16 %v124, %v122
    %v129 = vpack.c.b16 %v125, %v123
    %vm134 = vcmask 261120
    %v136 = vsel %vm134, %v103, 0
    %138 = vmatpush.bf16.msra.mxu0 0
    %139 = vmatpush.bf16.msra.mxu0 0
    %140 = vmatpush.bf16.msra.mxu0 0
    %141 = vmatpush.bf16.msra.mxu0 0
    %142 = vmatpush.bf16.msra.mxu0 0
    %143 = vmatpush.bf16.msra.mxu0 0
    %144 = vmatpush.bf16.msra.mxu0 %v128
    %145 = vmatpush.bf16.msra.mxu0 %v126
    %146 = vmatmul.bf16.gmra.mxu0 %v136
    %v147 = vpop.f32.mrf.mxu0
    %v148 = vadd.f32 %v110, %v147
    %v149 = vpop.f32.mrf.mxu0
    %150 = vdwg.mxu0
    %151 = vmatpush.bf16.msra.mxu0 0
    %152 = vmatpush.bf16.msra.mxu0 0
    %153 = vmatpush.bf16.msra.mxu0 0
    %154 = vmatpush.bf16.msra.mxu0 0
    %155 = vmatpush.bf16.msra.mxu0 0
    %156 = vmatpush.bf16.msra.mxu0 0
    %157 = vmatpush.bf16.msra.mxu0 %v129
    %158 = vmatpush.bf16.msra.mxu0 %v127
    %159 = vmatmul.bf16.gmra.mxu0 %v136
    %v160 = vpop.f32.mrf.mxu0
    %v161 = vadd.f32 %v111, %v160
    %v162 = vpop.f32.mrf.mxu0
    %163 = vdwg.mxu0
    %vm164 = vcmp.ge.f32.partialorder %v148, 0.0
    %vm165 = vcmp.ge.f32.partialorder %v161, 0.0
    %v166 = vmul.f32 %v148, 0.01
    %v167 = vmul.f32 %v161, 0.01
    %v168 = vsel %vm164, %v148, %v166
    %v169 = vsel %vm165, %v161, %v167
    %v170 = vpack.c.bf16 %v168, %v168
    %v171 = vpack.c.bf16 %v169, %v169
    %v172 = vld [vmem:[#allocation8] sm:$0xff]
    %v173 = vld [vmem:[#allocation8 + $0x8] sm:$0xff]
    %v174 = vld [vmem:[#allocation8 + $0x10] sm:$0xff]
    %v175 = vld [vmem:[#allocation8 + $0x18] sm:$0xff]
    %v176 = vld [vmem:[#allocation8 + $0x20] sm:$0xff]
    %v177 = vld [vmem:[#allocation8 + $0x28] sm:$0xff]
    %v178 = vld [vmem:[#allocation8 + $0x30] sm:$0xff]
    %v179 = vld [vmem:[#allocation8 + $0x38] sm:$0xff]
    %v180 = vld [vmem:[#allocation8 + $0x40] sm:$0xff]
    %v181 = vld [vmem:[#allocation8 + $0x48] sm:$0xff]
    %v182 = vld [vmem:[#allocation8 + $0x50] sm:$0xff]
    %v183 = vld [vmem:[#allocation8 + $0x58] sm:$0xff]
    %v184 = vld [vmem:[#allocation8 + $0x60] sm:$0xff]
    %v185 = vld [vmem:[#allocation8 + $0x68] sm:$0xff]
    %v186 = vld [vmem:[#allocation8 + $0x70] sm:$0xff]
    %v187 = vld [vmem:[#allocation8 + $0x78] sm:$0xff]
    %v188 = vld [vmem:[#allocation8 + $0x80] sm:$0xff]
    %v189 = vld [vmem:[#allocation8 + $0x88] sm:$0xff]
    %v190 = vld [vmem:[#allocation8 + $0x90] sm:$0xff]
    %v191 = vld [vmem:[#allocation8 + $0x98] sm:$0xff]
    %v192 = vld [vmem:[#allocation8 + $0xa0] sm:$0xff]
    %v193 = vld [vmem:[#allocation8 + $0xa8] sm:$0xff]
    %v194 = vld [vmem:[#allocation8 + $0xb0] sm:$0xff]
    %v195 = vld [vmem:[#allocation8 + $0xb8] sm:$0xff]
    %v196 = vld [vmem:[#allocation8 + $0xc0] sm:$0xff]
    %v197 = vld [vmem:[#allocation8 + $0xc8] sm:$0xff]
    %v198 = vld [vmem:[#allocation8 + $0xd0] sm:$0xff]
    %v199 = vld [vmem:[#allocation8 + $0xd8] sm:$0xff]
    %v200 = vld [vmem:[#allocation8 + $0xe0] sm:$0xff]
    %v201 = vld [vmem:[#allocation8 + $0xe8] sm:$0xff]
    %v202 = vld [vmem:[#allocation8 + $0xf0] sm:$0xff]
    %v203 = vld [vmem:[#allocation8 + $0xf8] sm:$0xff]
    %v204 = vld [vmem:[%s4] sm:$0x3]
    %v206 = vperm.slane %v204, 0
    %v207 = vperm.slane %v204, 1
    %v242 = vunpack.c.l.b16 %v172
    %v243 = vunpack.c.h.b16 %v172
    %v244 = vunpack.c.l.b16 %v173
    %v245 = vunpack.c.h.b16 %v173
    %v246 = vunpack.c.l.b16 %v174
    %v247 = vunpack.c.h.b16 %v174
    %v248 = vunpack.c.l.b16 %v175
    %v249 = vunpack.c.h.b16 %v175
    %v250 = vunpack.c.l.b16 %v176
    %v251 = vunpack.c.h.b16 %v176
    %v252 = vunpack.c.l.b16 %v177
    %v253 = vunpack.c.h.b16 %v177
    %v254 = vunpack.c.l.b16 %v178
    %v255 = vunpack.c.h.b16 %v178
    %v256 = vunpack.c.l.b16 %v179
    %v257 = vunpack.c.h.b16 %v179
    %v258 = vunpack.c.l.b16 %v180
    %v259 = vunpack.c.h.b16 %v180
    %v260 = vunpack.c.l.b16 %v181
    %v261 = vunpack.c.h.b16 %v181
    %v262 = vunpack.c.l.b16 %v182
    %v263 = vunpack.c.h.b16 %v182
    %v264 = vunpack.c.l.b16 %v183
    %v265 = vunpack.c.h.b16 %v183
    %v266 = vunpack.c.l.b16 %v184
    %v267 = vunpack.c.h.b16 %v184
    %v268 = vunpack.c.l.b16 %v185
    %v269 = vunpack.c.h.b16 %v185
    %v270 = vunpack.c.l.b16 %v186
    %v271 = vunpack.c.h.b16 %v186
    %v272 = vunpack.c.l.b16 %v187
    %v273 = vunpack.c.h.b16 %v187
    %v274 = vunpack.c.l.b16 %v188
    %v275 = vunpack.c.h.b16 %v188
    %v276 = vunpack.c.l.b16 %v189
    %v277 = vunpack.c.h.b16 %v189
    %v278 = vunpack.c.l.b16 %v190
    %v279 = vunpack.c.h.b16 %v190
    %v280 = vunpack.c.l.b16 %v191
    %v281 = vunpack.c.h.b16 %v191
    %v282 = vunpack.c.l.b16 %v192
    %v283 = vunpack.c.h.b16 %v192
    %v284 = vunpack.c.l.b16 %v193
    %v285 = vunpack.c.h.b16 %v193
    %v286 = vunpack.c.l.b16 %v194
    %v287 = vunpack.c.h.b16 %v194
    %v288 = vunpack.c.l.b16 %v195
    %v289 = vunpack.c.h.b16 %v195
    %v290 = vunpack.c.l.b16 %v196
    %v291 = vunpack.c.h.b16 %v196
    %v292 = vunpack.c.l.b16 %v197
    %v293 = vunpack.c.h.b16 %v197
    %v294 = vunpack.c.l.b16 %v198
    %v295 = vunpack.c.h.b16 %v198
    %v296 = vunpack.c.l.b16 %v199
    %v297 = vunpack.c.h.b16 %v199
    %v298 = vunpack.c.l.b16 %v200
    %v299 = vunpack.c.h.b16 %v200
    %v300 = vunpack.c.l.b16 %v201
    %v301 = vunpack.c.h.b16 %v201
    %v302 = vunpack.c.l.b16 %v202
    %v303 = vunpack.c.h.b16 %v202
    %v304 = vunpack.c.l.b16 %v203
    %v305 = vunpack.c.h.b16 %v203
    %v306 = vpack.c.b16 %v244, %v242
    %v307 = vpack.c.b16 %v245, %v243
    %v308 = vpack.c.b16 %v248, %v246
    %v309 = vpack.c.b16 %v249, %v247
    %v310 = vpack.c.b16 %v252, %v250
    %v311 = vpack.c.b16 %v253, %v251
    %v312 = vpack.c.b16 %v256, %v254
    %v313 = vpack.c.b16 %v257, %v255
    %v314 = vpack.c.b16 %v260, %v258
    %v315 = vpack.c.b16 %v261, %v259
    %v316 = vpack.c.b16 %v264, %v262
    %v317 = vpack.c.b16 %v265, %v263
    %v318 = vpack.c.b16 %v268, %v266
    %v319 = vpack.c.b16 %v269, %v267
    %v320 = vpack.c.b16 %v272, %v270
    %v321 = vpack.c.b16 %v273, %v271
    %v322 = vpack.c.b16 %v276, %v274
    %v323 = vpack.c.b16 %v277, %v275
    %v324 = vpack.c.b16 %v280, %v278
    %v325 = vpack.c.b16 %v281, %v279
    %v326 = vpack.c.b16 %v284, %v282
    %v327 = vpack.c.b16 %v285, %v283
    %v328 = vpack.c.b16 %v288, %v286
    %v329 = vpack.c.b16 %v289, %v287
    %v330 = vpack.c.b16 %v292, %v290
    %v331 = vpack.c.b16 %v293, %v291
    %v332 = vpack.c.b16 %v296, %v294
    %v333 = vpack.c.b16 %v297, %v295
    %v334 = vpack.c.b16 %v300, %v298
    %v335 = vpack.c.b16 %v301, %v299
    %v336 = vpack.c.b16 %v304, %v302
    %v337 = vpack.c.b16 %v305, %v303
    %370 = vmatpush.bf16.msra.mxu0 %v320
    %371 = vmatpush.bf16.msra.mxu0 %v318
    %372 = vmatpush.bf16.msra.mxu0 %v316
    %373 = vmatpush.bf16.msra.mxu0 %v314
    %374 = vmatpush.bf16.msra.mxu0 %v312
    %375 = vmatpush.bf16.msra.mxu0 %v310
    %376 = vmatpush.bf16.msra.mxu0 %v308
    %377 = vmatpush.bf16.msra.mxu0 %v306
    %378 = vmatmul.bf16.gmra.mxu0 %v170
    %v379 = vpop.f32.mrf.mxu0
    %v380 = vadd.f32 %v206, %v379
    %v381 = vpop.f32.mrf.mxu0
    %382 = vdwg.mxu0
    %383 = vmatpush.bf16.msra.mxu0 %v336
    %384 = vmatpush.bf16.msra.mxu0 %v334
    %385 = vmatpush.bf16.msra.mxu0 %v332
    %386 = vmatpush.bf16.msra.mxu0 %v330
    %387 = vmatpush.bf16.msra.mxu0 %v328
    %388 = vmatpush.bf16.msra.mxu0 %v326
    %389 = vmatpush.bf16.msra.mxu0 %v324
    %390 = vmatpush.bf16.msra.mxu0 %v322
    %391 = vmatmul.bf16.gmra.mxu0 %v171
    %v392 = vpop.f32.mrf.mxu0
    %v393 = vadd.f32 %v380, %v392
    %v394 = vpop.f32.mrf.mxu0
    %395 = vdwg.mxu0
    %396 = vmatpush.bf16.msra.mxu0 %v321
    %397 = vmatpush.bf16.msra.mxu0 %v319
    %398 = vmatpush.bf16.msra.mxu0 %v317
    %399 = vmatpush.bf16.msra.mxu0 %v315
    %400 = vmatpush.bf16.msra.mxu0 %v313
    %401 = vmatpush.bf16.msra.mxu0 %v311
    %402 = vmatpush.bf16.msra.mxu0 %v309
    %403 = vmatpush.bf16.msra.mxu0 %v307
    %404 = vmatmul.bf16.gmra.mxu0 %v170
    %v405 = vpop.f32.mrf.mxu0
    %v406 = vadd.f32 %v207, %v405
    %v407 = vpop.f32.mrf.mxu0
    %408 = vdwg.mxu0
    %409 = vmatpush.bf16.msra.mxu0 %v337
    %410 = vmatpush.bf16.msra.mxu0 %v335
    %411 = vmatpush.bf16.msra.mxu0 %v333
    %412 = vmatpush.bf16.msra.mxu0 %v331
    %413 = vmatpush.bf16.msra.mxu0 %v329
    %414 = vmatpush.bf16.msra.mxu0 %v327
    %415 = vmatpush.bf16.msra.mxu0 %v325
    %416 = vmatpush.bf16.msra.mxu0 %v323
    %417 = vmatmul.bf16.gmra.mxu0 %v171
    %v418 = vpop.f32.mrf.mxu0
    %v419 = vadd.f32 %v406, %v418
    %v420 = vpop.f32.mrf.mxu0
    %421 = vdwg.mxu0
    %vm422 = vcmp.ge.f32.partialorder %v393, 0.0
    %vm423 = vcmp.ge.f32.partialorder %v419, 0.0
    %v424 = vmul.f32 %v393, 0.01
    %v425 = vmul.f32 %v419, 0.01
    %v426 = vsel %vm422, %v393, %v424
    %v427 = vsel %vm423, %v419, %v425
    %v428 = vpack.c.bf16 %v426, %v426
    %v429 = vpack.c.bf16 %v427, %v427
    %v430 = vld [vmem:[#allocation10] sm:$0xf]
    %v431 = vld [vmem:[#allocation10 + $0x4] sm:$0xf]
    %v432 = vld [vmem:[#allocation10 + $0x8] sm:$0xf]
    %v433 = vld [vmem:[#allocation10 + $0xc] sm:$0xf]
    %v434 = vld [vmem:[#allocation10 + $0x10] sm:$0xf]
    %v435 = vld [vmem:[#allocation10 + $0x14] sm:$0xf]
    %v436 = vld [vmem:[#allocation10 + $0x18] sm:$0xf]
    %v437 = vld [vmem:[#allocation10 + $0x1c] sm:$0xf]
    %v438 = vld [vmem:[#allocation10 + $0x20] sm:$0xf]
    %v439 = vld [vmem:[#allocation10 + $0x24] sm:$0xf]
    %v440 = vld [vmem:[#allocation10 + $0x28] sm:$0xf]
    %v441 = vld [vmem:[#allocation10 + $0x2c] sm:$0xf]
    %v442 = vld [vmem:[#allocation10 + $0x30] sm:$0xf]
    %v443 = vld [vmem:[#allocation10 + $0x34] sm:$0xf]
    %v444 = vld [vmem:[#allocation10 + $0x38] sm:$0xf]
    %v445 = vld [vmem:[#allocation10 + $0x3c] sm:$0xf]
    %v446 = vld [vmem:[#allocation10 + $0x40] sm:$0xf]
    %v447 = vld [vmem:[#allocation10 + $0x44] sm:$0xf]
    %v448 = vld [vmem:[#allocation10 + $0x48] sm:$0xf]
    %v449 = vld [vmem:[#allocation10 + $0x4c] sm:$0xf]
    %v450 = vld [vmem:[#allocation10 + $0x50] sm:$0xf]
    %v451 = vld [vmem:[#allocation10 + $0x54] sm:$0xf]
    %v452 = vld [vmem:[#allocation10 + $0x58] sm:$0xf]
    %v453 = vld [vmem:[#allocation10 + $0x5c] sm:$0xf]
    %v454 = vld [vmem:[#allocation10 + $0x60] sm:$0xf]
    %v455 = vld [vmem:[#allocation10 + $0x64] sm:$0xf]
    %v456 = vld [vmem:[#allocation10 + $0x68] sm:$0xf]
    %v457 = vld [vmem:[#allocation10 + $0x6c] sm:$0xf]
    %v458 = vld [vmem:[#allocation10 + $0x70] sm:$0xf]
    %v459 = vld [vmem:[#allocation10 + $0x74] sm:$0xf]
    %v460 = vld [vmem:[#allocation10 + $0x78] sm:$0xf]
    %v461 = vld [vmem:[#allocation10 + $0x7c] sm:$0xf]
    %v462 = vld [vmem:[%s6] sm:$0x1]
    %v464 = vperm.slane %v462, 0
    %v498 = vunpack.c.l.b16 %v430
    %v499 = vunpack.c.l.b16 %v431
    %v500 = vunpack.c.l.b16 %v432
    %v501 = vunpack.c.l.b16 %v433
    %v502 = vunpack.c.l.b16 %v434
    %v503 = vunpack.c.l.b16 %v435
    %v504 = vunpack.c.l.b16 %v436
    %v505 = vunpack.c.l.b16 %v437
    %v506 = vunpack.c.l.b16 %v438
    %v507 = vunpack.c.l.b16 %v439
    %v508 = vunpack.c.l.b16 %v440
    %v509 = vunpack.c.l.b16 %v441
    %v510 = vunpack.c.l.b16 %v442
    %v511 = vunpack.c.l.b16 %v443
    %v512 = vunpack.c.l.b16 %v444
    %v513 = vunpack.c.l.b16 %v445
    %v514 = vunpack.c.l.b16 %v446
    %v515 = vunpack.c.l.b16 %v447
    %v516 = vunpack.c.l.b16 %v448
    %v517 = vunpack.c.l.b16 %v449
    %v518 = vunpack.c.l.b16 %v450
    %v519 = vunpack.c.l.b16 %v451
    %v520 = vunpack.c.l.b16 %v452
    %v521 = vunpack.c.l.b16 %v453
    %v522 = vunpack.c.l.b16 %v454
    %v523 = vunpack.c.l.b16 %v455
    %v524 = vunpack.c.l.b16 %v456
    %v525 = vunpack.c.l.b16 %v457
    %v526 = vunpack.c.l.b16 %v458
    %v527 = vunpack.c.l.b16 %v459
    %v528 = vunpack.c.l.b16 %v460
    %v529 = vunpack.c.l.b16 %v461
    %v530 = vpack.c.b16 %v499, %v498
    %v531 = vpack.c.b16 %v501, %v500
    %v532 = vpack.c.b16 %v503, %v502
    %v533 = vpack.c.b16 %v505, %v504
    %v534 = vpack.c.b16 %v507, %v506
    %v535 = vpack.c.b16 %v509, %v508
    %v536 = vpack.c.b16 %v511, %v510
    %v537 = vpack.c.b16 %v513, %v512
    %v538 = vpack.c.b16 %v515, %v514
    %v539 = vpack.c.b16 %v517, %v516
    %v540 = vpack.c.b16 %v519, %v518
    %v541 = vpack.c.b16 %v521, %v520
    %v542 = vpack.c.b16 %v523, %v522
    %v543 = vpack.c.b16 %v525, %v524
    %v544 = vpack.c.b16 %v527, %v526
    %v545 = vpack.c.b16 %v529, %v528
    %562 = vmatpush.bf16.msra.mxu0 %v537
    %563 = vmatpush.bf16.msra.mxu0 %v536
    %564 = vmatpush.bf16.msra.mxu0 %v535
    %565 = vmatpush.bf16.msra.mxu0 %v534
    %566 = vmatpush.bf16.msra.mxu0 %v533
    %567 = vmatpush.bf16.msra.mxu0 %v532
    %568 = vmatpush.bf16.msra.mxu0 %v531
    %569 = vmatpush.bf16.msra.mxu0 %v530
    %570 = vmatmul.bf16.gmra.mxu0 %v428
    %v571 = vpop.f32.mrf.mxu0
    %v572 = vadd.f32 %v464, %v571
    %v573 = vpop.f32.mrf.mxu0
    %574 = vdwg.mxu0
    %575 = vmatpush.bf16.msra.mxu0 %v545
    %576 = vmatpush.bf16.msra.mxu0 %v544
    %577 = vmatpush.bf16.msra.mxu0 %v543
    %578 = vmatpush.bf16.msra.mxu0 %v542
    %579 = vmatpush.bf16.msra.mxu0 %v541
    %580 = vmatpush.bf16.msra.mxu0 %v540
    %581 = vmatpush.bf16.msra.mxu0 %v539
    %582 = vmatpush.bf16.msra.mxu0 %v538
    %583 = vmatmul.bf16.gmra.mxu0 %v429
    %v584 = vpop.f32.mrf.mxu0
    %v585 = vadd.f32 %v572, %v584
    %v586 = vpop.f32.mrf.mxu0
    %587 = vdwg.mxu0
    %588 = vst [vmem:[#allocation11] sm:$0xff] %v585
    // Predicated region
    $region50: #{tpu_custom_call.1} parent=1 // pred_check
      _
    $region51: #{tpu_custom_call.1} parent=1 // pred_check_branch
      %590 = sbr.rel (0) target = $region53
    $region52: #{tpu_custom_call.1} parent=1 // pred_region
      %592 = vsyncadd [#allocation4], 0
      %s594 = sshll.u32 [#allocation11], 4
      %s595 = int_to_ptr.vmem [resolvable:$true] %s594
      %s596 = sshll.u32 %s7, 4
      %s597 = int_to_ptr.hbm [resolvable:$true] %s596
      %599 = dma.vmem_to_hbm [thread:$0]  %s595, 128, %s597, [#allocation4]
    $region53: #{tpu_custom_call.1} parent=1 // pred_fallthru
      _
    // Predicated region
    $region54: #{tpu_custom_call.1} parent=1 // pred_check
      _
    $region55: #{tpu_custom_call.1} parent=1 // pred_check_branch
      %601 = sbr.rel (0) target = $region57
    $region56: #{tpu_custom_call.1} parent=1 // pred_region
      %603 = dma.done [#allocation4], 128
    $region57: #{tpu_custom_call.1} parent=1 // pred_fallthru
      _
    %604 = vsyncpa [#allocation3], 1
    %605 = vsyncpa [#allocation6], 1
    %606 = vsyncpa [#allocation9], 1
    %607 = vsyncpa [#allocation4], 1

</llo_original>
